<compile_context>
chip_gen: v5e
topology: v5e:2x2
jax: 0.10.0
libtpu: 0.0.40
codegen_flags: <defaults>
</compile_context>

<pallas_src>
import jax
import jax.numpy as jnp
import numpy as np
from jax.experimental import pallas as pl
from jax.experimental.pallas import tpu as pltpu

# ---- configuration consistent with the module's __init__ ----
FEAT_NUM = 4
EMB_SIZE = 32
E_SIZE = FEAT_NUM * EMB_SIZE          # 128  (en_layer0 width, per-class feature width)
S_SIZE = EMB_SIZE                     # 32   (sta_inter_layer output)
V_SIZE = EMB_SIZE // 2                # 16   (en_layer output)
TASK_DIM = 32
NUM_CLASS = 4
MAX_SHOT = 5
N_SAMPLES = 8
CLUSTERS_K = 8                        # MemoryUnit param (unused in forward)
OUT_PAD = 128                         # lane-dense padded output width


def _full_spec(shape):
    nd = len(shape)
    return pl.BlockSpec(shape, lambda i, nd=nd: (0,) * nd)


# ------------------------------ fused kernel ---------------------------------
def _task_encoder_kernel(
    x_ref, yrow_ref, ycol_ref,
    en0_w0_ref, en0_b0_ref, en0_w1_ref, en0_b1_ref,
    sta_wv_ref, sta_wm_ref, sta_wn_ref, sta_b_ref,
    en_w0_ref, en_b0_ref, en_w1_ref, en_b1_ref,
    s2_wv_ref, s2_wm_ref, s2_wn_ref, s2_ws_ref, s2_b_ref,
    predw_ref, predb_ref,
    o_ref,
):
    f32 = jnp.float32
    n = x_ref.shape[0]
    c = NUM_CLASS

    # ---- en_layer0: Linear -> ReLU -> Linear -> (N, E) ----
    h = jnp.dot(x_ref[...], en0_w0_ref[...], preferred_element_type=f32) + en0_b0_ref[...]
    h = jnp.maximum(h, 0.0)
    h = jnp.dot(h, en0_w1_ref[...], preferred_element_type=f32) + en0_b1_ref[...]

    # ---- one-hot class masks built in-kernel from y (both orientations) ----
    cls_cn = jax.lax.broadcasted_iota(jnp.int32, (c, n), 0)
    mask_cn = (cls_cn == yrow_ref[...]).astype(f32)                 # (C, N)
    cls_nc = jax.lax.broadcasted_iota(jnp.int32, (n, c), 1)
    mask_nc = (cls_nc == ycol_ref[...]).astype(f32)                 # (N, C)

    cnt = jnp.sum(mask_cn, axis=1, keepdims=True)                   # (C, 1)
    present = (cnt > 0.0).astype(f32)                               # (C, 1)
    inv_cnt = pl.reciprocal(jnp.maximum(cnt, 1.0), approx=True)

    # ---- per-class masked mean / two-pass unbiased var / N_c ----
    mean_c = jnp.dot(mask_cn, h, preferred_element_type=f32) * inv_cnt        # (C, E)
    assigned = jnp.dot(mask_nc, mean_c, preferred_element_type=f32)           # (N, E)
    diff = h - assigned
    sqsum = jnp.dot(mask_cn, diff * diff, preferred_element_type=f32)         # (C, E)
    var_c = sqsum * pl.reciprocal(jnp.maximum(cnt - 1.0, 1.0), approx=True)
    var_c = jnp.where(cnt > 1.0, var_c, jnp.zeros_like(var_c))
    # N_c = (len-1)/(max_shot-1); zero for absent classes (masked downstream anyway)
    nc = present * (cnt - 1.0) * (1.0 / (MAX_SHOT - 1.0))                     # (C, 1)

    # ---- s = relu(sta_inter_layer([var | mean | N_c]))  (split weights, no concat) ----
    s = (jnp.dot(var_c, sta_wv_ref[...], preferred_element_type=f32)
         + jnp.dot(mean_c, sta_wm_ref[...], preferred_element_type=f32)
         + nc * sta_wn_ref[...]
         + sta_b_ref[...])
    s = jnp.maximum(s, 0.0)                                                   # (C, S)

    # ---- v = en_layer(s): Linear -> ReLU -> Linear ----
    v = jnp.dot(s, en_w0_ref[...], preferred_element_type=f32) + en_b0_ref[...]
    v = jnp.maximum(v, 0.0)
    v = jnp.dot(v, en_w1_ref[...], preferred_element_type=f32) + en_b1_ref[...]   # (C, V)

    # ---- statistic pooling over PRESENT classes only ----
    npres = jnp.sum(present, axis=0, keepdims=True)                           # (1, 1)
    inv_np = pl.reciprocal(jnp.maximum(npres, 1.0), approx=True)
    v_mean = jnp.sum(present * v, axis=0, keepdims=True) * inv_np             # (1, V)
    dv = v - v_mean
    v_var = (jnp.sum(present * dv * dv, axis=0, keepdims=True)
             * pl.reciprocal(jnp.maximum(npres - 1.0, 1.0), approx=True))
    v_var = jnp.where(npres > 1.0, v_var, jnp.zeros_like(v_var))              # (1, V)
    v_N = jnp.sum(nc, axis=0, keepdims=True) * inv_np                         # (1, 1)

    # ---- positional-weighted pairwise cosine similarity ----
    # absent classes have mean_c == 0 exactly -> their cos rows/cols are 0, no extra mask.
    # inv_norm = rsqrt(max(sumsq, 1e-14)) == 1 / max(norm, 1e-7)  (single EUP op)
    sumsq = jnp.sum(mean_c * mean_c, axis=1, keepdims=True)                   # (C, 1)
    mn = mean_c * jax.lax.rsqrt(jnp.maximum(sumsq, 1e-14))
    cos = jax.lax.dot_general(mn, mn, (((1,), (1,)), ((), ())),
                              preferred_element_type=f32)                     # (C, C)
    ii = jax.lax.broadcasted_iota(jnp.int32, (c, c), 0)
    jj = jax.lax.broadcasted_iota(jnp.int32, (c, c), 1)
    upper = (ii < jj).astype(f32)
    # compact rank of class j among present classes, as a lane row (1, C)
    rank_row = jnp.sum(upper * present, axis=0, keepdims=True)
    # sum_{i<j}(rank[j]-rank[i])*cos[i,j] == sum_{i,j} sign(j-i)*rank[j]*cos[i,j] (cos symmetric)
    sgn = upper - (jj < ii).astype(f32)
    sim_mat = sgn * cos * rank_row
    sim = jnp.sum(jnp.sum(sim_mat, axis=1, keepdims=True), axis=0, keepdims=True)  # (1, 1)

    # ---- task_emb = relu(sta_inter_layer2([v_var | v_mean | v_N | sim]))  (split weights) ----
    t = (jnp.dot(v_var, s2_wv_ref[...], preferred_element_type=f32)
         + jnp.dot(v_mean, s2_wm_ref[...], preferred_element_type=f32)
         + v_N * s2_wn_ref[...]
         + sim * s2_ws_ref[...]
         + s2_b_ref[...])
    task_emb = jnp.maximum(t, 0.0)                                            # (1, TASK_DIM)

    # ---- predictor (weights pre-padded to 128 lanes -> single lane-dense store) ----
    o_ref[...] = (jnp.dot(task_emb, predw_ref[...], preferred_element_type=f32)
                  + predb_ref[...])


# ------------------------------ wrapper / model -------------------------------
def init_params(key):
    """Deterministic synthetic init (weights stored as (in, out); biases as (1, out))."""
    def lin(k, din, dout):
        k1, k2 = jax.random.split(k)
        w = jax.random.normal(k1, (din, dout), jnp.float32) * (1.0 / jnp.sqrt(din))
        b = jax.random.normal(k2, (1, dout), jnp.float32) * 0.01
        return w, b

    keys = jax.random.split(key, 8)
    p = {}
    p['en0_w0'], p['en0_b0'] = lin(keys[0], E_SIZE, E_SIZE)
    p['en0_w1'], p['en0_b1'] = lin(keys[1], E_SIZE, E_SIZE)
    p['sta_w'], p['sta_b'] = lin(keys[2], 2 * E_SIZE + 1, S_SIZE)
    p['en_w0'], p['en_b0'] = lin(keys[3], S_SIZE, V_SIZE)
    p['en_w1'], p['en_b1'] = lin(keys[4], V_SIZE, V_SIZE)
    p['sta2_w'], p['sta2_b'] = lin(keys[5], 2 * V_SIZE + 2, TASK_DIM)
    p['pred_w'], p['pred_b'] = lin(keys[6], TASK_DIM, TASK_DIM)
    # MemoryUnit array exists in __init__ but is unused in forward()
    p['mem_array'] = jax.random.normal(keys[7], (CLUSTERS_K, TASK_DIM), jnp.float32)
    return p


@jax.jit
def task_encoder_forward(x, y, p):
    """TaskEncoderSSLMem.forward(x, y) = predictor(_pre_forward(x, y)) — one pallas_call."""
    n = x.shape[0]
    yrow = y.astype(jnp.int32).reshape(1, n)
    ycol = y.astype(jnp.int32).reshape(n, 1)
    sta_w, sta2_w = p['sta_w'], p['sta2_w']

    args = (
        x, yrow, ycol,
        p['en0_w0'], p['en0_b0'], p['en0_w1'], p['en0_b1'],
        # sta_inter_layer split into [var | mean | N_c] lane-dense pieces
        sta_w[:E_SIZE], sta_w[E_SIZE:2 * E_SIZE], sta_w[2 * E_SIZE:2 * E_SIZE + 1], p['sta_b'],
        p['en_w0'], p['en_b0'], p['en_w1'], p['en_b1'],
        # sta_inter_layer2 split into [v_var | v_mean | v_N | sim] pieces
        sta2_w[:V_SIZE], sta2_w[V_SIZE:2 * V_SIZE],
        sta2_w[2 * V_SIZE:2 * V_SIZE + 1], sta2_w[2 * V_SIZE + 1:2 * V_SIZE + 2], p['sta2_b'],
        # predictor padded to 128 output lanes for a lane-dense final store
        jnp.pad(p['pred_w'], ((0, 0), (0, OUT_PAD - TASK_DIM))),
        jnp.pad(p['pred_b'], ((0, 0), (0, OUT_PAD - TASK_DIM))),
    )
    in_specs = [_full_spec(a.shape) for a in args]

    out = pl.pallas_call(
        _task_encoder_kernel,
        grid=(1,),
        in_specs=in_specs,
        out_specs=_full_spec((1, OUT_PAD)),
        out_shape=jax.ShapeDtypeStruct((1, OUT_PAD), jnp.float32),
        compiler_params=pltpu.CompilerParams(dimension_semantics=("arbitrary",)),
        cost_estimate=pl.CostEstimate(flops=700_000, transcendentals=32,
                                      bytes_accessed=200_000),
    )(*args)
    return out[0, :TASK_DIM]


# ----------------------------- pure-JAX reference -----------------------------
def reference_forward(x, y_list, p):
    relu = lambda a: jnp.maximum(a, 0.0)
    h = relu(x @ p['en0_w0'] + p['en0_b0']) @ p['en0_w1'] + p['en0_b1']
    s_rows, means, ncs = [], [], []
    for c in range(NUM_CLASS):
        idx = [i for i in range(len(y_list)) if y_list[i] == c]
        if not idx:
            continue
        cx = h[jnp.array(idx)]
        mean = jnp.mean(cx, axis=0)
        var = jnp.zeros_like(mean) if len(idx) == 1 else jnp.var(cx, axis=0, ddof=1)
        nc = (len(idx) - 1.0) / (MAX_SHOT - 1.0)
        s_rows.append(jnp.concatenate([var, mean, jnp.array([nc], jnp.float32)]))
        means.append(mean)
        ncs.append(nc)
    s = jnp.stack(s_rows)
    s = relu(s @ p['sta_w'] + p['sta_b'])
    v = relu(s @ p['en_w0'] + p['en_b0']) @ p['en_w1'] + p['en_b1']
    if s.shape[0] == 1:
        v_var = jnp.zeros((V_SIZE,), jnp.float32)
    else:
        v_var = jnp.var(v, axis=0, ddof=1)
    v_mean = jnp.mean(v, axis=0)
    v_N = float(sum(ncs)) / len(ncs)
    mt = jnp.stack(means)
    mn = mt / jnp.maximum(jnp.linalg.norm(mt, axis=-1, keepdims=True), 1e-7)
    cos = mn @ mn.T
    sim = jnp.zeros(())
    for i in range(len(means)):
        for j in range(i + 1, len(means)):
            sim = sim + (j - i) * cos[i, j]
    vec = jnp.concatenate([v_var, v_mean,
                           jnp.array([v_N], jnp.float32),
                           jnp.reshape(sim, (1,))])
    te = relu(vec @ p['sta2_w'] + p['sta2_b'])
    return (te @ p['pred_w'] + p['pred_b']).reshape(-1)


# ------------------------------------ main ------------------------------------
if __name__ == "__main__":
    key = jax.random.PRNGKey(0)
    kx, kp = jax.random.split(key)
    x = jax.random.normal(kx, (N_SAMPLES, E_SIZE), jnp.float32)
    y = jnp.array([0, 0, 1, 1, 2, 2, 3, 3], dtype=jnp.int32)
    params = init_params(kp)

    out = task_encoder_forward(x, y, params)
    out = jax.block_until_ready(out)
    assert out.shape == (TASK_DIM,)

    ref = reference_forward(x, [int(v) for v in np.asarray(y)], params)
    np.testing.assert_allclose(np.asarray(out), np.asarray(ref), rtol=2e-2, atol=2e-2)

    print("KERNEL_OK")
</pallas_src>

<mosaic_0001>
module attributes {stable_mosaic.version = 11 : i64} {
  func.func @_task_encoder_kernel(%arg0: i32, %arg1: memref<8x128xf32, #tpu.memory_space<vmem>>, %arg2: memref<1x8xi32, #tpu.memory_space<vmem>>, %arg3: memref<8x1xi32, #tpu.memory_space<vmem>>, %arg4: memref<128x128xf32, #tpu.memory_space<vmem>>, %arg5: memref<1x128xf32, #tpu.memory_space<vmem>>, %arg6: memref<128x128xf32, #tpu.memory_space<vmem>>, %arg7: memref<1x128xf32, #tpu.memory_space<vmem>>, %arg8: memref<128x32xf32, #tpu.memory_space<vmem>>, %arg9: memref<128x32xf32, #tpu.memory_space<vmem>>, %arg10: memref<1x32xf32, #tpu.memory_space<vmem>>, %arg11: memref<1x32xf32, #tpu.memory_space<vmem>>, %arg12: memref<32x16xf32, #tpu.memory_space<vmem>>, %arg13: memref<1x16xf32, #tpu.memory_space<vmem>>, %arg14: memref<16x16xf32, #tpu.memory_space<vmem>>, %arg15: memref<1x16xf32, #tpu.memory_space<vmem>>, %arg16: memref<16x32xf32, #tpu.memory_space<vmem>>, %arg17: memref<16x32xf32, #tpu.memory_space<vmem>>, %arg18: memref<1x32xf32, #tpu.memory_space<vmem>>, %arg19: memref<1x32xf32, #tpu.memory_space<vmem>>, %arg20: memref<1x32xf32, #tpu.memory_space<vmem>>, %arg21: memref<32x128xf32, #tpu.memory_space<vmem>>, %arg22: memref<1x128xf32, #tpu.memory_space<vmem>>, %arg23: memref<1x128xf32, #tpu.memory_space<vmem>>) attributes {dimension_semantics = [#tpu.dimension_semantics<arbitrary>], iteration_bounds = array<i64: 1>, scalar_prefetch = 0 : i64, scratch_operands = 0 : i64, tpu.core_type = #tpu.core_type<tc>, window_params = [{pipeline_mode = #tpu.pipeline_mode<synchronous>, transform_indices = @transform_0, window_bounds = array<i64: 8, 128>}, {pipeline_mode = #tpu.pipeline_mode<synchronous>, transform_indices = @transform_1, window_bounds = array<i64: 1, 8>}, {pipeline_mode = #tpu.pipeline_mode<synchronous>, transform_indices = @transform_2, window_bounds = array<i64: 8, 1>}, {pipeline_mode = #tpu.pipeline_mode<synchronous>, transform_indices = @transform_3, window_bounds = array<i64: 128, 128>}, {pipeline_mode = #tpu.pipeline_mode<synchronous>, transform_indices = @transform_4, window_bounds = array<i64: 1, 128>}, {pipeline_mode = #tpu.pipeline_mode<synchronous>, transform_indices = @transform_5, window_bounds = array<i64: 128, 128>}, {pipeline_mode = #tpu.pipeline_mode<synchronous>, transform_indices = @transform_6, window_bounds = array<i64: 1, 128>}, {pipeline_mode = #tpu.pipeline_mode<synchronous>, transform_indices = @transform_7, window_bounds = array<i64: 128, 32>}, {pipeline_mode = #tpu.pipeline_mode<synchronous>, transform_indices = @transform_8, window_bounds = array<i64: 128, 32>}, {pipeline_mode = #tpu.pipeline_mode<synchronous>, transform_indices = @transform_9, window_bounds = array<i64: 1, 32>}, {pipeline_mode = #tpu.pipeline_mode<synchronous>, transform_indices = @transform_10, window_bounds = array<i64: 1, 32>}, {pipeline_mode = #tpu.pipeline_mode<synchronous>, transform_indices = @transform_11, window_bounds = array<i64: 32, 16>}, {pipeline_mode = #tpu.pipeline_mode<synchronous>, transform_indices = @transform_12, window_bounds = array<i64: 1, 16>}, {pipeline_mode = #tpu.pipeline_mode<synchronous>, transform_indices = @transform_13, window_bounds = array<i64: 16, 16>}, {pipeline_mode = #tpu.pipeline_mode<synchronous>, transform_indices = @transform_14, window_bounds = array<i64: 1, 16>}, {pipeline_mode = #tpu.pipeline_mode<synchronous>, transform_indices = @transform_15, window_bounds = array<i64: 16, 32>}, {pipeline_mode = #tpu.pipeline_mode<synchronous>, transform_indices = @transform_16, window_bounds = array<i64: 16, 32>}, {pipeline_mode = #tpu.pipeline_mode<synchronous>, transform_indices = @transform_17, window_bounds = array<i64: 1, 32>}, {pipeline_mode = #tpu.pipeline_mode<synchronous>, transform_indices = @transform_18, window_bounds = array<i64: 1, 32>}, {pipeline_mode = #tpu.pipeline_mode<synchronous>, transform_indices = @transform_19, window_bounds = array<i64: 1, 32>}, {pipeline_mode = #tpu.pipeline_mode<synchronous>, transform_indices = @transform_20, window_bounds = array<i64: 32, 128>}, {pipeline_mode = #tpu.pipeline_mode<synchronous>, transform_indices = @transform_21, window_bounds = array<i64: 1, 128>}, {pipeline_mode = #tpu.pipeline_mode<synchronous>, transform_indices = @transform_22, window_bounds = array<i64: 1, 128>}]} {
    %c0 = arith.constant 0 : index
    %c0_0 = arith.constant 0 : index
    %0 = vector.load %arg1[%c0, %c0_0] : memref<8x128xf32, #tpu.memory_space<vmem>>, vector<8x128xf32>
    %c0_1 = arith.constant 0 : index
    %c0_2 = arith.constant 0 : index
    %1 = vector.load %arg4[%c0_1, %c0_2] : memref<128x128xf32, #tpu.memory_space<vmem>>, vector<128x128xf32>
    %cst = arith.constant dense<0.000000e+00> : vector<8x128xf32>
    %2 = tpu.matmul %0, %1, %cst {dimension_numbers = #tpu.dot_dimension_numbers<[1], [0], [0], [1], [0, 0, 1, 1], [], []>} : vector<8x128xf32>, vector<128x128xf32>, vector<8x128xf32> -> vector<8x128xf32>
    %c0_3 = arith.constant 0 : index
    %c0_4 = arith.constant 0 : index
    %3 = vector.load %arg5[%c0_3, %c0_4] : memref<1x128xf32, #tpu.memory_space<vmem>>, vector<1x128xf32>
    %4 = vector.broadcast %3 : vector<1x128xf32> to vector<8x128xf32>
    %5 = arith.addf %2, %4 : vector<8x128xf32>
    %cst_5 = arith.constant 0.000000e+00 : f32
    %6 = vector.broadcast %cst_5 : f32 to vector<8x128xf32>
    %7 = arith.maximumf %5, %6 : vector<8x128xf32>
    %c0_6 = arith.constant 0 : index
    %c0_7 = arith.constant 0 : index
    %8 = vector.load %arg6[%c0_6, %c0_7] : memref<128x128xf32, #tpu.memory_space<vmem>>, vector<128x128xf32>
    %cst_8 = arith.constant dense<0.000000e+00> : vector<8x128xf32>
    %9 = tpu.matmul %7, %8, %cst_8 {dimension_numbers = #tpu.dot_dimension_numbers<[1], [0], [0], [1], [0, 0, 1, 1], [], []>} : vector<8x128xf32>, vector<128x128xf32>, vector<8x128xf32> -> vector<8x128xf32>
    %c0_9 = arith.constant 0 : index
    %c0_10 = arith.constant 0 : index
    %10 = vector.load %arg7[%c0_9, %c0_10] : memref<1x128xf32, #tpu.memory_space<vmem>>, vector<1x128xf32>
    %11 = vector.broadcast %10 : vector<1x128xf32> to vector<8x128xf32>
    %12 = arith.addf %9, %11 : vector<8x128xf32>
    %13 = tpu.iota {dimensions = array<i32: 0>} : vector<4x8xi32>
    %c0_11 = arith.constant 0 : index
    %c0_12 = arith.constant 0 : index
    %14 = vector.load %arg2[%c0_11, %c0_12] : memref<1x8xi32, #tpu.memory_space<vmem>>, vector<1x8xi32>
    %15 = vector.broadcast %14 : vector<1x8xi32> to vector<4x8xi32>
    %16 = arith.cmpi eq, %13, %15 : vector<4x8xi32>
    %17 = arith.extui %16 : vector<4x8xi1> to vector<4x8xi32>
    %18 = arith.sitofp %17 : vector<4x8xi32> to vector<4x8xf32>
    %19 = tpu.iota {dimensions = array<i32: 1>} : vector<8x4xi32>
    %c0_13 = arith.constant 0 : index
    %c0_14 = arith.constant 0 : index
    %20 = vector.load %arg3[%c0_13, %c0_14] : memref<8x1xi32, #tpu.memory_space<vmem>>, vector<8x1xi32>
    %21 = vector.broadcast %20 : vector<8x1xi32> to vector<8x4xi32>
    %22 = arith.cmpi eq, %19, %21 : vector<8x4xi32>
    %23 = arith.extui %22 : vector<8x4xi1> to vector<8x4xi32>
    %24 = arith.sitofp %23 : vector<8x4xi32> to vector<8x4xf32>
    %cst_15 = arith.constant dense<0.000000e+00> : vector<4xf32>
    %25 = vector.multi_reduction <add>, %18, %cst_15 [1] : vector<4x8xf32> to vector<4xf32>
    %26 = vector.shape_cast %25 : vector<4xf32> to vector<4x1xf32>
    %cst_16 = arith.constant 0.000000e+00 : f32
    %27 = vector.broadcast %cst_16 : f32 to vector<4x1xf32>
    %28 = arith.cmpf ogt, %26, %27 : vector<4x1xf32>
    %29 = arith.extui %28 : vector<4x1xi1> to vector<4x1xi32>
    %30 = arith.sitofp %29 : vector<4x1xi32> to vector<4x1xf32>
    %cst_17 = arith.constant 1.000000e+00 : f32
    %31 = vector.broadcast %cst_17 : f32 to vector<4x1xf32>
    %32 = arith.maximumf %26, %31 : vector<4x1xf32>
    %33 = tpu.reciprocal %32 {approx = true} : vector<4x1xf32> -> vector<4x1xf32>
    %cst_18 = arith.constant dense<0.000000e+00> : vector<4x128xf32>
    %34 = tpu.matmul %18, %12, %cst_18 {dimension_numbers = #tpu.dot_dimension_numbers<[1], [0], [0], [1], [0, 0, 1, 1], [], []>} : vector<4x8xf32>, vector<8x128xf32>, vector<4x128xf32> -> vector<4x128xf32>
    %35 = vector.broadcast %33 : vector<4x1xf32> to vector<4x128xf32>
    %36 = arith.mulf %34, %35 : vector<4x128xf32>
    %cst_19 = arith.constant dense<0.000000e+00> : vector<8x128xf32>
    %37 = tpu.matmul %24, %36, %cst_19 {dimension_numbers = #tpu.dot_dimension_numbers<[1], [0], [0], [1], [0, 0, 1, 1], [], []>} : vector<8x4xf32>, vector<4x128xf32>, vector<8x128xf32> -> vector<8x128xf32>
    %38 = arith.subf %12, %37 : vector<8x128xf32>
    %39 = arith.mulf %38, %38 : vector<8x128xf32>
    %cst_20 = arith.constant dense<0.000000e+00> : vector<4x128xf32>
    %40 = tpu.matmul %18, %39, %cst_20 {dimension_numbers = #tpu.dot_dimension_numbers<[1], [0], [0], [1], [0, 0, 1, 1], [], []>} : vector<4x8xf32>, vector<8x128xf32>, vector<4x128xf32> -> vector<4x128xf32>
    %cst_21 = arith.constant 1.000000e+00 : f32
    %41 = vector.broadcast %cst_21 : f32 to vector<4x1xf32>
    %42 = arith.subf %26, %41 : vector<4x1xf32>
    %cst_22 = arith.constant 1.000000e+00 : f32
    %43 = vector.broadcast %cst_22 : f32 to vector<4x1xf32>
    %44 = arith.maximumf %42, %43 : vector<4x1xf32>
    %45 = tpu.reciprocal %44 {approx = true} : vector<4x1xf32> -> vector<4x1xf32>
    %46 = vector.broadcast %45 : vector<4x1xf32> to vector<4x128xf32>
    %47 = arith.mulf %40, %46 : vector<4x128xf32>
    %cst_23 = arith.constant 1.000000e+00 : f32
    %48 = vector.broadcast %cst_23 : f32 to vector<4x1xf32>
    %49 = arith.cmpf ogt, %26, %48 : vector<4x1xf32>
    %cst_24 = arith.constant 0.000000e+00 : f32
    %50 = vector.broadcast %cst_24 : f32 to vector<4x128xf32>
    %51 = vector.shape_cast %49 : vector<4x1xi1> to vector<4x1xi1>
    %52 = vector.broadcast %51 : vector<4x1xi1> to vector<4x128xi1>
    %53 = arith.select %52, %47, %50 : vector<4x128xi1>, vector<4x128xf32>
    %cst_25 = arith.constant 1.000000e+00 : f32
    %54 = vector.broadcast %cst_25 : f32 to vector<4x1xf32>
    %55 = arith.subf %26, %54 : vector<4x1xf32>
    %56 = arith.mulf %30, %55 : vector<4x1xf32>
    %cst_26 = arith.constant 2.500000e-01 : f32
    %57 = vector.broadcast %cst_26 : f32 to vector<4x1xf32>
    %58 = arith.mulf %56, %57 : vector<4x1xf32>
    %c0_27 = arith.constant 0 : index
    %c0_28 = arith.constant 0 : index
    %59 = vector.load %arg8[%c0_27, %c0_28] : memref<128x32xf32, #tpu.memory_space<vmem>>, vector<128x32xf32>
    %cst_29 = arith.constant dense<0.000000e+00> : vector<4x32xf32>
    %60 = tpu.matmul %53, %59, %cst_29 {dimension_numbers = #tpu.dot_dimension_numbers<[1], [0], [0], [1], [0, 0, 1, 1], [], []>} : vector<4x128xf32>, vector<128x32xf32>, vector<4x32xf32> -> vector<4x32xf32>
    %c0_30 = arith.constant 0 : index
    %c0_31 = arith.constant 0 : index
    %61 = vector.load %arg9[%c0_30, %c0_31] : memref<128x32xf32, #tpu.memory_space<vmem>>, vector<128x32xf32>
    %cst_32 = arith.constant dense<0.000000e+00> : vector<4x32xf32>
    %62 = tpu.matmul %36, %61, %cst_32 {dimension_numbers = #tpu.dot_dimension_numbers<[1], [0], [0], [1], [0, 0, 1, 1], [], []>} : vector<4x128xf32>, vector<128x32xf32>, vector<4x32xf32> -> vector<4x32xf32>
    %63 = arith.addf %60, %62 : vector<4x32xf32>
    %c0_33 = arith.constant 0 : index
    %c0_34 = arith.constant 0 : index
    %64 = vector.load %arg10[%c0_33, %c0_34] : memref<1x32xf32, #tpu.memory_space<vmem>>, vector<1x32xf32>
    %65 = vector.broadcast %58 : vector<4x1xf32> to vector<4x32xf32>
    %66 = vector.broadcast %64 : vector<1x32xf32> to vector<4x32xf32>
    %67 = arith.mulf %65, %66 : vector<4x32xf32>
    %68 = arith.addf %63, %67 : vector<4x32xf32>
    %c0_35 = arith.constant 0 : index
    %c0_36 = arith.constant 0 : index
    %69 = vector.load %arg11[%c0_35, %c0_36] : memref<1x32xf32, #tpu.memory_space<vmem>>, vector<1x32xf32>
    %70 = vector.broadcast %69 : vector<1x32xf32> to vector<4x32xf32>
    %71 = arith.addf %68, %70 : vector<4x32xf32>
    %cst_37 = arith.constant 0.000000e+00 : f32
    %72 = vector.broadcast %cst_37 : f32 to vector<4x32xf32>
    %73 = arith.maximumf %71, %72 : vector<4x32xf32>
    %c0_38 = arith.constant 0 : index
    %c0_39 = arith.constant 0 : index
    %74 = vector.load %arg12[%c0_38, %c0_39] : memref<32x16xf32, #tpu.memory_space<vmem>>, vector<32x16xf32>
    %cst_40 = arith.constant dense<0.000000e+00> : vector<4x16xf32>
    %75 = tpu.matmul %73, %74, %cst_40 {dimension_numbers = #tpu.dot_dimension_numbers<[1], [0], [0], [1], [0, 0, 1, 1], [], []>} : vector<4x32xf32>, vector<32x16xf32>, vector<4x16xf32> -> vector<4x16xf32>
    %c0_41 = arith.constant 0 : index
    %c0_42 = arith.constant 0 : index
    %76 = vector.load %arg13[%c0_41, %c0_42] : memref<1x16xf32, #tpu.memory_space<vmem>>, vector<1x16xf32>
    %77 = vector.broadcast %76 : vector<1x16xf32> to vector<4x16xf32>
    %78 = arith.addf %75, %77 : vector<4x16xf32>
    %cst_43 = arith.constant 0.000000e+00 : f32
    %79 = vector.broadcast %cst_43 : f32 to vector<4x16xf32>
    %80 = arith.maximumf %78, %79 : vector<4x16xf32>
    %c0_44 = arith.constant 0 : index
    %c0_45 = arith.constant 0 : index
    %81 = vector.load %arg14[%c0_44, %c0_45] : memref<16x16xf32, #tpu.memory_space<vmem>>, vector<16x16xf32>
    %cst_46 = arith.constant dense<0.000000e+00> : vector<4x16xf32>
    %82 = tpu.matmul %80, %81, %cst_46 {dimension_numbers = #tpu.dot_dimension_numbers<[1], [0], [0], [1], [0, 0, 1, 1], [], []>} : vector<4x16xf32>, vector<16x16xf32>, vector<4x16xf32> -> vector<4x16xf32>
    %c0_47 = arith.constant 0 : index
    %c0_48 = arith.constant 0 : index
    %83 = vector.load %arg15[%c0_47, %c0_48] : memref<1x16xf32, #tpu.memory_space<vmem>>, vector<1x16xf32>
    %84 = vector.broadcast %83 : vector<1x16xf32> to vector<4x16xf32>
    %85 = arith.addf %82, %84 : vector<4x16xf32>
    %cst_49 = arith.constant dense<0.000000e+00> : vector<1xf32>
    %86 = vector.multi_reduction <add>, %30, %cst_49 [0] : vector<4x1xf32> to vector<1xf32>
    %87 = vector.shape_cast %86 : vector<1xf32> to vector<1x1xf32>
    %cst_50 = arith.constant 1.000000e+00 : f32
    %88 = vector.broadcast %cst_50 : f32 to vector<1x1xf32>
    %89 = arith.maximumf %87, %88 : vector<1x1xf32>
    %90 = tpu.reciprocal %89 {approx = true} : vector<1x1xf32> -> vector<1x1xf32>
    %91 = vector.broadcast %30 : vector<4x1xf32> to vector<4x16xf32>
    %92 = arith.mulf %91, %85 : vector<4x16xf32>
    %cst_51 = arith.constant dense<0.000000e+00> : vector<16xf32>
    %93 = vector.multi_reduction <add>, %92, %cst_51 [0] : vector<4x16xf32> to vector<16xf32>
    %94 = vector.shape_cast %93 : vector<16xf32> to vector<1x16xf32>
    %95 = vector.broadcast %90 : vector<1x1xf32> to vector<1x16xf32>
    %96 = arith.mulf %94, %95 : vector<1x16xf32>
    %97 = vector.broadcast %96 : vector<1x16xf32> to vector<4x16xf32>
    %98 = arith.subf %85, %97 : vector<4x16xf32>
    %99 = vector.broadcast %30 : vector<4x1xf32> to vector<4x16xf32>
    %100 = arith.mulf %99, %98 : vector<4x16xf32>
    %101 = arith.mulf %100, %98 : vector<4x16xf32>
    %cst_52 = arith.constant dense<0.000000e+00> : vector<16xf32>
    %102 = vector.multi_reduction <add>, %101, %cst_52 [0] : vector<4x16xf32> to vector<16xf32>
    %103 = vector.shape_cast %102 : vector<16xf32> to vector<1x16xf32>
    %cst_53 = arith.constant 1.000000e+00 : f32
    %104 = vector.broadcast %cst_53 : f32 to vector<1x1xf32>
    %105 = arith.subf %87, %104 : vector<1x1xf32>
    %cst_54 = arith.constant 1.000000e+00 : f32
    %106 = vector.broadcast %cst_54 : f32 to vector<1x1xf32>
    %107 = arith.maximumf %105, %106 : vector<1x1xf32>
    %108 = tpu.reciprocal %107 {approx = true} : vector<1x1xf32> -> vector<1x1xf32>
    %109 = vector.broadcast %108 : vector<1x1xf32> to vector<1x16xf32>
    %110 = arith.mulf %103, %109 : vector<1x16xf32>
    %cst_55 = arith.constant 1.000000e+00 : f32
    %111 = vector.broadcast %cst_55 : f32 to vector<1x1xf32>
    %112 = arith.cmpf ogt, %87, %111 : vector<1x1xf32>
    %cst_56 = arith.constant 0.000000e+00 : f32
    %113 = vector.broadcast %cst_56 : f32 to vector<1x16xf32>
    %114 = vector.shape_cast %112 : vector<1x1xi1> to vector<1x1xi1>
    %115 = vector.broadcast %114 : vector<1x1xi1> to vector<1x16xi1>
    %116 = arith.select %115, %110, %113 : vector<1x16xi1>, vector<1x16xf32>
    %cst_57 = arith.constant dense<0.000000e+00> : vector<1xf32>
    %117 = vector.multi_reduction <add>, %58, %cst_57 [0] : vector<4x1xf32> to vector<1xf32>
    %118 = vector.shape_cast %117 : vector<1xf32> to vector<1x1xf32>
    %119 = arith.mulf %118, %90 : vector<1x1xf32>
    %120 = arith.mulf %36, %36 : vector<4x128xf32>
    %cst_58 = arith.constant dense<0.000000e+00> : vector<4xf32>
    %121 = vector.multi_reduction <add>, %120, %cst_58 [1] : vector<4x128xf32> to vector<4xf32>
    %122 = vector.shape_cast %121 : vector<4xf32> to vector<4x1xf32>
    %cst_59 = arith.constant 9.99999982E-15 : f32
    %123 = vector.broadcast %cst_59 : f32 to vector<4x1xf32>
    %124 = arith.maximumf %122, %123 : vector<4x1xf32>
    %125 = math.rsqrt %124 : vector<4x1xf32>
    %126 = vector.broadcast %125 : vector<4x1xf32> to vector<4x128xf32>
    %127 = arith.mulf %36, %126 : vector<4x128xf32>
    %cst_60 = arith.constant dense<0.000000e+00> : vector<4x4xf32>
    %128 = tpu.matmul %127, %127, %cst_60 {dimension_numbers = #tpu.dot_dimension_numbers<[1], [1], [0], [0], [0, 0, 1, 0], [], []>} : vector<4x128xf32>, vector<4x128xf32>, vector<4x4xf32> -> vector<4x4xf32>
    %129 = tpu.iota {dimensions = array<i32: 0>} : vector<4x4xi32>
    %130 = tpu.iota {dimensions = array<i32: 1>} : vector<4x4xi32>
    %131 = arith.cmpi slt, %129, %130 : vector<4x4xi32>
    %132 = arith.extui %131 : vector<4x4xi1> to vector<4x4xi32>
    %133 = arith.sitofp %132 : vector<4x4xi32> to vector<4x4xf32>
    %134 = vector.broadcast %30 : vector<4x1xf32> to vector<4x4xf32>
    %135 = arith.mulf %133, %134 : vector<4x4xf32>
    %cst_61 = arith.constant dense<0.000000e+00> : vector<4xf32>
    %136 = vector.multi_reduction <add>, %135, %cst_61 [0] : vector<4x4xf32> to vector<4xf32>
    %137 = vector.shape_cast %136 : vector<4xf32> to vector<1x4xf32>
    %138 = arith.cmpi slt, %130, %129 : vector<4x4xi32>
    %139 = arith.extui %138 : vector<4x4xi1> to vector<4x4xi32>
    %140 = arith.sitofp %139 : vector<4x4xi32> to vector<4x4xf32>
    %141 = arith.subf %133, %140 : vector<4x4xf32>
    %142 = arith.mulf %141, %128 : vector<4x4xf32>
    %143 = vector.broadcast %137 : vector<1x4xf32> to vector<4x4xf32>
    %144 = arith.mulf %142, %143 : vector<4x4xf32>
    %cst_62 = arith.constant dense<0.000000e+00> : vector<4xf32>
    %145 = vector.multi_reduction <add>, %144, %cst_62 [1] : vector<4x4xf32> to vector<4xf32>
    %146 = vector.shape_cast %145 : vector<4xf32> to vector<4x1xf32>
    %cst_63 = arith.constant dense<0.000000e+00> : vector<1xf32>
    %147 = vector.multi_reduction <add>, %146, %cst_63 [0] : vector<4x1xf32> to vector<1xf32>
    %148 = vector.shape_cast %147 : vector<1xf32> to vector<1x1xf32>
    %c0_64 = arith.constant 0 : index
    %c0_65 = arith.constant 0 : index
    %149 = vector.load %arg16[%c0_64, %c0_65] : memref<16x32xf32, #tpu.memory_space<vmem>>, vector<16x32xf32>
    %cst_66 = arith.constant dense<0.000000e+00> : vector<1x32xf32>
    %150 = tpu.matmul %116, %149, %cst_66 {dimension_numbers = #tpu.dot_dimension_numbers<[1], [0], [0], [1], [0, 0, 1, 1], [], []>} : vector<1x16xf32>, vector<16x32xf32>, vector<1x32xf32> -> vector<1x32xf32>
    %c0_67 = arith.constant 0 : index
    %c0_68 = arith.constant 0 : index
    %151 = vector.load %arg17[%c0_67, %c0_68] : memref<16x32xf32, #tpu.memory_space<vmem>>, vector<16x32xf32>
    %cst_69 = arith.constant dense<0.000000e+00> : vector<1x32xf32>
    %152 = tpu.matmul %96, %151, %cst_69 {dimension_numbers = #tpu.dot_dimension_numbers<[1], [0], [0], [1], [0, 0, 1, 1], [], []>} : vector<1x16xf32>, vector<16x32xf32>, vector<1x32xf32> -> vector<1x32xf32>
    %153 = arith.addf %150, %152 : vector<1x32xf32>
    %c0_70 = arith.constant 0 : index
    %c0_71 = arith.constant 0 : index
    %154 = vector.load %arg18[%c0_70, %c0_71] : memref<1x32xf32, #tpu.memory_space<vmem>>, vector<1x32xf32>
    %155 = vector.broadcast %119 : vector<1x1xf32> to vector<1x32xf32>
    %156 = arith.mulf %155, %154 : vector<1x32xf32>
    %157 = arith.addf %153, %156 : vector<1x32xf32>
    %c0_72 = arith.constant 0 : index
    %c0_73 = arith.constant 0 : index
    %158 = vector.load %arg19[%c0_72, %c0_73] : memref<1x32xf32, #tpu.memory_space<vmem>>, vector<1x32xf32>
    %159 = vector.broadcast %148 : vector<1x1xf32> to vector<1x32xf32>
    %160 = arith.mulf %159, %158 : vector<1x32xf32>
    %161 = arith.addf %157, %160 : vector<1x32xf32>
    %c0_74 = arith.constant 0 : index
    %c0_75 = arith.constant 0 : index
    %162 = vector.load %arg20[%c0_74, %c0_75] : memref<1x32xf32, #tpu.memory_space<vmem>>, vector<1x32xf32>
    %163 = arith.addf %161, %162 : vector<1x32xf32>
    %cst_76 = arith.constant 0.000000e+00 : f32
    %164 = vector.broadcast %cst_76 : f32 to vector<1x32xf32>
    %165 = arith.maximumf %163, %164 : vector<1x32xf32>
    %c0_77 = arith.constant 0 : index
    %c0_78 = arith.constant 0 : index
    %166 = vector.load %arg21[%c0_77, %c0_78] : memref<32x128xf32, #tpu.memory_space<vmem>>, vector<32x128xf32>
    %cst_79 = arith.constant dense<0.000000e+00> : vector<1x128xf32>
    %167 = tpu.matmul %165, %166, %cst_79 {dimension_numbers = #tpu.dot_dimension_numbers<[1], [0], [0], [1], [0, 0, 1, 1], [], []>} : vector<1x32xf32>, vector<32x128xf32>, vector<1x128xf32> -> vector<1x128xf32>
    %c0_80 = arith.constant 0 : index
    %c0_81 = arith.constant 0 : index
    %168 = vector.load %arg22[%c0_80, %c0_81] : memref<1x128xf32, #tpu.memory_space<vmem>>, vector<1x128xf32>
    %169 = arith.addf %167, %168 : vector<1x128xf32>
    %c0_82 = arith.constant 0 : index
    %c0_83 = arith.constant 0 : index
    %170 = vector.load %arg23[%c0_82, %c0_83] : memref<1x128xf32, #tpu.memory_space<vmem>>, vector<1x128xf32>
    tpu.vector_store %arg23[%c0_82, %c0_83], %169 {strides = array<i32>} : memref<1x128xf32, #tpu.memory_space<vmem>>, vector<1x128xf32>,
    return
  }
  func.func @transform_0(%arg0: i32) -> (i32, i32) {
    %c0_i32 = arith.constant 0 : i32
    %c0_i32_0 = arith.constant 0 : i32
    %c0_i32_1 = arith.constant 0 : i32
    return %c0_i32, %c0_i32_0 : i32, i32
  }
  func.func @transform_1(%arg0: i32) -> (i32, i32) {
    %c0_i32 = arith.constant 0 : i32
    %c0_i32_0 = arith.constant 0 : i32
    %c0_i32_1 = arith.constant 0 : i32
    return %c0_i32, %c0_i32_0 : i32, i32
  }
  func.func @transform_2(%arg0: i32) -> (i32, i32) {
    %c0_i32 = arith.constant 0 : i32
    %c0_i32_0 = arith.constant 0 : i32
    %c0_i32_1 = arith.constant 0 : i32
    return %c0_i32, %c0_i32_0 : i32, i32
  }
  func.func @transform_3(%arg0: i32) -> (i32, i32) {
    %c0_i32 = arith.constant 0 : i32
    %c0_i32_0 = arith.constant 0 : i32
    %c0_i32_1 = arith.constant 0 : i32
    return %c0_i32, %c0_i32_0 : i32, i32
  }
  func.func @transform_4(%arg0: i32) -> (i32, i32) {
    %c0_i32 = arith.constant 0 : i32
    %c0_i32_0 = arith.constant 0 : i32
    %c0_i32_1 = arith.constant 0 : i32
    return %c0_i32, %c0_i32_0 : i32, i32
  }
  func.func @transform_5(%arg0: i32) -> (i32, i32) {
    %c0_i32 = arith.constant 0 : i32
    %c0_i32_0 = arith.constant 0 : i32
    %c0_i32_1 = arith.constant 0 : i32
    return %c0_i32, %c0_i32_0 : i32, i32
  }
  func.func @transform_6(%arg0: i32) -> (i32, i32) {
    %c0_i32 = arith.constant 0 : i32
    %c0_i32_0 = arith.constant 0 : i32
    %c0_i32_1 = arith.constant 0 : i32
    return %c0_i32, %c0_i32_0 : i32, i32
  }
  func.func @transform_7(%arg0: i32) -> (i32, i32) {
    %c0_i32 = arith.constant 0 : i32
    %c0_i32_0 = arith.constant 0 : i32
    %c0_i32_1 = arith.constant 0 : i32
    return %c0_i32, %c0_i32_0 : i32, i32
  }
  func.func @transform_8(%arg0: i32) -> (i32, i32) {
    %c0_i32 = arith.constant 0 : i32
    %c0_i32_0 = arith.constant 0 : i32
    %c0_i32_1 = arith.constant 0 : i32
    return %c0_i32, %c0_i32_0 : i32, i32
  }
  func.func @transform_9(%arg0: i32) -> (i32, i32) {
    %c0_i32 = arith.constant 0 : i32
    %c0_i32_0 = arith.constant 0 : i32
    %c0_i32_1 = arith.constant 0 : i32
    return %c0_i32, %c0_i32_0 : i32, i32
  }
  func.func @transform_10(%arg0: i32) -> (i32, i32) {
    %c0_i32 = arith.constant 0 : i32
    %c0_i32_0 = arith.constant 0 : i32
    %c0_i32_1 = arith.constant 0 : i32
    return %c0_i32, %c0_i32_0 : i32, i32
  }
  func.func @transform_11(%arg0: i32) -> (i32, i32) {
    %c0_i32 = arith.constant 0 : i32
    %c0_i32_0 = arith.constant 0 : i32
    %c0_i32_1 = arith.constant 0 : i32
    return %c0_i32, %c0_i32_0 : i32, i32
  }
  func.func @transform_12(%arg0: i32) -> (i32, i32) {
    %c0_i32 = arith.constant 0 : i32
    %c0_i32_0 = arith.constant 0 : i32
    %c0_i32_1 = arith.constant 0 : i32
    return %c0_i32, %c0_i32_0 : i32, i32
  }
  func.func @transform_13(%arg0: i32) -> (i32, i32) {
    %c0_i32 = arith.constant 0 : i32
    %c0_i32_0 = arith.constant 0 : i32
    %c0_i32_1 = arith.constant 0 : i32
    return %c0_i32, %c0_i32_0 : i32, i32
  }
  func.func @transform_14(%arg0: i32) -> (i32, i32) {
    %c0_i32 = arith.constant 0 : i32
    %c0_i32_0 = arith.constant 0 : i32
    %c0_i32_1 = arith.constant 0 : i32
    return %c0_i32, %c0_i32_0 : i32, i32
  }
  func.func @transform_15(%arg0: i32) -> (i32, i32) {
    %c0_i32 = arith.constant 0 : i32
    %c0_i32_0 = arith.constant 0 : i32
    %c0_i32_1 = arith.constant 0 : i32
    return %c0_i32, %c0_i32_0 : i32, i32
  }
  func.func @transform_16(%arg0: i32) -> (i32, i32) {
    %c0_i32 = arith.constant 0 : i32
    %c0_i32_0 = arith.constant 0 : i32
    %c0_i32_1 = arith.constant 0 : i32
    return %c0_i32, %c0_i32_0 : i32, i32
  }
  func.func @transform_17(%arg0: i32) -> (i32, i32) {
    %c0_i32 = arith.constant 0 : i32
    %c0_i32_0 = arith.constant 0 : i32
    %c0_i32_1 = arith.constant 0 : i32
    return %c0_i32, %c0_i32_0 : i32, i32
  }
  func.func @transform_18(%arg0: i32) -> (i32, i32) {
    %c0_i32 = arith.constant 0 : i32
    %c0_i32_0 = arith.constant 0 : i32
    %c0_i32_1 = arith.constant 0 : i32
    return %c0_i32, %c0_i32_0 : i32, i32
  }
  func.func @transform_19(%arg0: i32) -> (i32, i32) {
    %c0_i32 = arith.constant 0 : i32
    %c0_i32_0 = arith.constant 0 : i32
    %c0_i32_1 = arith.constant 0 : i32
    return %c0_i32, %c0_i32_0 : i32, i32
  }
  func.func @transform_20(%arg0: i32) -> (i32, i32) {
    %c0_i32 = arith.constant 0 : i32
    %c0_i32_0 = arith.constant 0 : i32
    %c0_i32_1 = arith.constant 0 : i32
    return %c0_i32, %c0_i32_0 : i32, i32
  }
  func.func @transform_21(%arg0: i32) -> (i32, i32) {
    %c0_i32 = arith.constant 0 : i32
    %c0_i32_0 = arith.constant 0 : i32
    %c0_i32_1 = arith.constant 0 : i32
    return %c0_i32, %c0_i32_0 : i32, i32
  }
  func.func @transform_22(%arg0: i32) -> (i32, i32) {
    %c0_i32 = arith.constant 0 : i32
    %c0_i32_0 = arith.constant 0 : i32
    %c0_i32_1 = arith.constant 0 : i32
    return %c0_i32, %c0_i32_0 : i32, i32
  }
}

</mosaic_0001>

<llo_original>
// kernel: task_encoder_forward.1
$region0: #{task_encoder_forward.1}
  #allocation0 [shape = 'u32[]', space=smem, size = 0x4, offset = 0x4, fixed_abs, tag = 'smem constant byte address 0x4 - core index']
  #allocation1 [shape = 'u32[72,128]{1,0:T(1,128)}', space=vmem, size = 0x9000, scoped, tag = 'internal scratch']
  %s0 = inlined_call_operand.vmem [shape: f32[8,128], index: 0, kind: input, shape index: {}]
  %s1 = inlined_call_operand.vmem [shape: s32[1,8], index: 1, kind: input, shape index: {}]
  %s2 = inlined_call_operand.vmem [shape: s32[8,1], index: 2, kind: input, shape index: {}]
  %s3 = inlined_call_operand.vmem [shape: f32[128,128], index: 3, kind: input, shape index: {}]
  %s4 = inlined_call_operand.vmem [shape: f32[1,128], index: 4, kind: input, shape index: {}]
  %s5 = inlined_call_operand.vmem [shape: f32[128,128], index: 5, kind: input, shape index: {}]
  %s6 = inlined_call_operand.vmem [shape: f32[1,128], index: 6, kind: input, shape index: {}]
  %s7 = inlined_call_operand.vmem [shape: f32[128,32], index: 7, kind: input, shape index: {}]
  %s8 = inlined_call_operand.vmem [shape: f32[128,32], index: 8, kind: input, shape index: {}]
  %s9 = inlined_call_operand.vmem [shape: f32[1,32], index: 9, kind: input, shape index: {}]
  %s10 = inlined_call_operand.vmem [shape: f32[1,32], index: 10, kind: input, shape index: {}]
  %s11 = inlined_call_operand.vmem [shape: f32[32,16], index: 11, kind: input, shape index: {}]
  %s12 = inlined_call_operand.vmem [shape: f32[1,16], index: 12, kind: input, shape index: {}]
  %s13 = inlined_call_operand.vmem [shape: f32[16,16], index: 13, kind: input, shape index: {}]
  %s14 = inlined_call_operand.vmem [shape: f32[1,16], index: 14, kind: input, shape index: {}]
  %s15 = inlined_call_operand.vmem [shape: f32[16,32], index: 15, kind: input, shape index: {}]
  %s16 = inlined_call_operand.vmem [shape: f32[16,32], index: 16, kind: input, shape index: {}]
  %s17 = inlined_call_operand.vmem [shape: f32[1,32], index: 17, kind: input, shape index: {}]
  %s18 = inlined_call_operand.vmem [shape: f32[1,32], index: 18, kind: input, shape index: {}]
  %s19 = inlined_call_operand.vmem [shape: f32[1,32], index: 19, kind: input, shape index: {}]
  %s20 = inlined_call_operand.vmem [shape: f32[32,128], index: 20, kind: input, shape index: {}]
  %s21 = inlined_call_operand.vmem [shape: f32[1,128], index: 21, kind: input, shape index: {}]
  %s22 = inlined_call_operand.vmem [shape: f32[1,128], index: 22, kind: output, shape index: {}]
  %s23 = sld [smem:[#allocation0]]
  $region98: #{task_encoder_forward.1} parent=0
    _
  %s25 = ssub.s32 1, %s23
  %s26 = scalar_select 0, %s25, %s23
  // Predicated region
  $region2: #{task_encoder_forward.1} parent=0 // pred_check
    _
  $region3: #{task_encoder_forward.1} parent=0 // pred_check_branch
    %28 = sbr.rel (0) target = $region5
  $region4: #{task_encoder_forward.1} parent=0 // pred_region
    _
  $region5: #{task_encoder_forward.1} parent=0 // pred_fallthru
    _
  // Predicated region
  $region6: #{task_encoder_forward.1} parent=0 // pred_check
    _
  $region7: #{task_encoder_forward.1} parent=0 // pred_check_branch
    %30 = sbr.rel (0) target = $region9
  $region8: #{task_encoder_forward.1} parent=0 // pred_region
    _
  $region9: #{task_encoder_forward.1} parent=0 // pred_fallthru
    _
  // Predicated region
  $region10: #{task_encoder_forward.1} parent=0 // pred_check
    _
  $region11: #{task_encoder_forward.1} parent=0 // pred_check_branch
    %32 = sbr.rel (0) target = $region13
  $region12: #{task_encoder_forward.1} parent=0 // pred_region
    _
  $region13: #{task_encoder_forward.1} parent=0 // pred_fallthru
    _
  // Predicated region
  $region14: #{task_encoder_forward.1} parent=0 // pred_check
    _
  $region15: #{task_encoder_forward.1} parent=0 // pred_check_branch
    %34 = sbr.rel (0) target = $region17
  $region16: #{task_encoder_forward.1} parent=0 // pred_region
    _
  $region17: #{task_encoder_forward.1} parent=0 // pred_fallthru
    _
  // Predicated region
  $region18: #{task_encoder_forward.1} parent=0 // pred_check
    _
  $region19: #{task_encoder_forward.1} parent=0 // pred_check_branch
    %36 = sbr.rel (0) target = $region21
  $region20: #{task_encoder_forward.1} parent=0 // pred_region
    _
  $region21: #{task_encoder_forward.1} parent=0 // pred_fallthru
    _
  // Predicated region
  $region22: #{task_encoder_forward.1} parent=0 // pred_check
    _
  $region23: #{task_encoder_forward.1} parent=0 // pred_check_branch
    %38 = sbr.rel (0) target = $region25
  $region24: #{task_encoder_forward.1} parent=0 // pred_region
    _
  $region25: #{task_encoder_forward.1} parent=0 // pred_fallthru
    _
  // Predicated region
  $region26: #{task_encoder_forward.1} parent=0 // pred_check
    _
  $region27: #{task_encoder_forward.1} parent=0 // pred_check_branch
    %40 = sbr.rel (0) target = $region29
  $region28: #{task_encoder_forward.1} parent=0 // pred_region
    _
  $region29: #{task_encoder_forward.1} parent=0 // pred_fallthru
    _
  // Predicated region
  $region30: #{task_encoder_forward.1} parent=0 // pred_check
    _
  $region31: #{task_encoder_forward.1} parent=0 // pred_check_branch
    %42 = sbr.rel (0) target = $region33
  $region32: #{task_encoder_forward.1} parent=0 // pred_region
    _
  $region33: #{task_encoder_forward.1} parent=0 // pred_fallthru
    _
  // Predicated region
  $region34: #{task_encoder_forward.1} parent=0 // pred_check
    _
  $region35: #{task_encoder_forward.1} parent=0 // pred_check_branch
    %44 = sbr.rel (0) target = $region37
  $region36: #{task_encoder_forward.1} parent=0 // pred_region
    _
  $region37: #{task_encoder_forward.1} parent=0 // pred_fallthru
    _
  // Predicated region
  $region38: #{task_encoder_forward.1} parent=0 // pred_check
    _
  $region39: #{task_encoder_forward.1} parent=0 // pred_check_branch
    %46 = sbr.rel (0) target = $region41
  $region40: #{task_encoder_forward.1} parent=0 // pred_region
    _
  $region41: #{task_encoder_forward.1} parent=0 // pred_fallthru
    _
  // Predicated region
  $region42: #{task_encoder_forward.1} parent=0 // pred_check
    _
  $region43: #{task_encoder_forward.1} parent=0 // pred_check_branch
    %48 = sbr.rel (0) target = $region45
  $region44: #{task_encoder_forward.1} parent=0 // pred_region
    _
  $region45: #{task_encoder_forward.1} parent=0 // pred_fallthru
    _
  // Predicated region
  $region46: #{task_encoder_forward.1} parent=0 // pred_check
    _
  $region47: #{task_encoder_forward.1} parent=0 // pred_check_branch
    %50 = sbr.rel (0) target = $region49
  $region48: #{task_encoder_forward.1} parent=0 // pred_region
    _
  $region49: #{task_encoder_forward.1} parent=0 // pred_fallthru
    _
  // Predicated region
  $region50: #{task_encoder_forward.1} parent=0 // pred_check
    _
  $region51: #{task_encoder_forward.1} parent=0 // pred_check_branch
    %52 = sbr.rel (0) target = $region53
  $region52: #{task_encoder_forward.1} parent=0 // pred_region
    _
  $region53: #{task_encoder_forward.1} parent=0 // pred_fallthru
    _
  // Predicated region
  $region54: #{task_encoder_forward.1} parent=0 // pred_check
    _
  $region55: #{task_encoder_forward.1} parent=0 // pred_check_branch
    %54 = sbr.rel (0) target = $region57
  $region56: #{task_encoder_forward.1} parent=0 // pred_region
    _
  $region57: #{task_encoder_forward.1} parent=0 // pred_fallthru
    _
  // Predicated region
  $region58: #{task_encoder_forward.1} parent=0 // pred_check
    _
  $region59: #{task_encoder_forward.1} parent=0 // pred_check_branch
    %56 = sbr.rel (0) target = $region61
  $region60: #{task_encoder_forward.1} parent=0 // pred_region
    _
  $region61: #{task_encoder_forward.1} parent=0 // pred_fallthru
    _
  // Predicated region
  $region62: #{task_encoder_forward.1} parent=0 // pred_check
    _
  $region63: #{task_encoder_forward.1} parent=0 // pred_check_branch
    %58 = sbr.rel (0) target = $region65
  $region64: #{task_encoder_forward.1} parent=0 // pred_region
    _
  $region65: #{task_encoder_forward.1} parent=0 // pred_fallthru
    _
  // Predicated region
  $region66: #{task_encoder_forward.1} parent=0 // pred_check
    _
  $region67: #{task_encoder_forward.1} parent=0 // pred_check_branch
    %60 = sbr.rel (0) target = $region69
  $region68: #{task_encoder_forward.1} parent=0 // pred_region
    _
  $region69: #{task_encoder_forward.1} parent=0 // pred_fallthru
    _
  // Predicated region
  $region70: #{task_encoder_forward.1} parent=0 // pred_check
    _
  $region71: #{task_encoder_forward.1} parent=0 // pred_check_branch
    %62 = sbr.rel (0) target = $region73
  $region72: #{task_encoder_forward.1} parent=0 // pred_region
    _
  $region73: #{task_encoder_forward.1} parent=0 // pred_fallthru
    _
  // Predicated region
  $region74: #{task_encoder_forward.1} parent=0 // pred_check
    _
  $region75: #{task_encoder_forward.1} parent=0 // pred_check_branch
    %64 = sbr.rel (0) target = $region77
  $region76: #{task_encoder_forward.1} parent=0 // pred_region
    _
  $region77: #{task_encoder_forward.1} parent=0 // pred_fallthru
    _
  // Predicated region
  $region78: #{task_encoder_forward.1} parent=0 // pred_check
    _
  $region79: #{task_encoder_forward.1} parent=0 // pred_check_branch
    %66 = sbr.rel (0) target = $region81
  $region80: #{task_encoder_forward.1} parent=0 // pred_region
    _
  $region81: #{task_encoder_forward.1} parent=0 // pred_fallthru
    _
  // Predicated region
  $region82: #{task_encoder_forward.1} parent=0 // pred_check
    _
  $region83: #{task_encoder_forward.1} parent=0 // pred_check_branch
    %68 = sbr.rel (0) target = $region85
  $region84: #{task_encoder_forward.1} parent=0 // pred_region
    _
  $region85: #{task_encoder_forward.1} parent=0 // pred_fallthru
    _
  // Predicated region
  $region86: #{task_encoder_forward.1} parent=0 // pred_check
    _
  $region87: #{task_encoder_forward.1} parent=0 // pred_check_branch
    %70 = sbr.rel (0) target = $region89
  $region88: #{task_encoder_forward.1} parent=0 // pred_region
    _
  $region89: #{task_encoder_forward.1} parent=0 // pred_fallthru
    _
  %v71 = vld [vmem:[%s0] sm:$0xff]
  %v72 = vld [vmem:[%s3] sm:$0xff]
  %v73 = vld [vmem:[%s3 + $0x8] sm:$0xff]
  %v74 = vld [vmem:[%s3 + $0x10] sm:$0xff]
  %v75 = vld [vmem:[%s3 + $0x18] sm:$0xff]
  %v76 = vld [vmem:[%s3 + $0x20] sm:$0xff]
  %v77 = vld [vmem:[%s3 + $0x28] sm:$0xff]
  %v78 = vld [vmem:[%s3 + $0x30] sm:$0xff]
  %v79 = vld [vmem:[%s3 + $0x38] sm:$0xff]
  %v80 = vld [vmem:[%s3 + $0x40] sm:$0xff]
  %v81 = vld [vmem:[%s3 + $0x48] sm:$0xff]
  %v82 = vld [vmem:[%s3 + $0x50] sm:$0xff]
  %v83 = vld [vmem:[%s3 + $0x58] sm:$0xff]
  %v84 = vld [vmem:[%s3 + $0x60] sm:$0xff]
  %v85 = vld [vmem:[%s3 + $0x68] sm:$0xff]
  %v86 = vld [vmem:[%s3 + $0x70] sm:$0xff]
  %v87 = vld [vmem:[%s3 + $0x78] sm:$0xff]
  %v88 = vld [vmem:[%s4] sm:$0x1]
  %v90 = vperm.slane %v88, 0
  %92 = vmatpush.msra.mxu0 %v87
  %93 = vmatpush.msra.mxu0 %v86
  %94 = vmatpush.msra.mxu0 %v85
  %95 = vmatpush.msra.mxu0 %v84
  %96 = vmatpush.msra.mxu0 %v83
  %97 = vmatpush.msra.mxu0 %v82
  %98 = vmatpush.msra.mxu0 %v81
  %99 = vmatpush.msra.mxu0 %v80
  %100 = vmatpush.msra.mxu0 %v79
  %101 = vmatpush.msra.mxu0 %v78
  %102 = vmatpush.msra.mxu0 %v77
  %103 = vmatpush.msra.mxu0 %v76
  %104 = vmatpush.msra.mxu0 %v75
  %105 = vmatpush.msra.mxu0 %v74
  %106 = vmatpush.msra.mxu0 %v73
  %107 = vmatpush.msra.mxu0 %v72
  %108 = vmatmul.f32.gmra.mxu0 %v71
  %v109 = vpop.f32.mrf.mxu0
  %v110 = vadd.f32 %v90, %v109
  %111 = vdwg.mxu0
  %v112 = vmax.f32 %v110, 0.0
  %v113 = vld [vmem:[%s5] sm:$0xff]
  %v114 = vld [vmem:[%s5 + $0x8] sm:$0xff]
  %v115 = vld [vmem:[%s5 + $0x10] sm:$0xff]
  %v116 = vld [vmem:[%s5 + $0x18] sm:$0xff]
  %v117 = vld [vmem:[%s5 + $0x20] sm:$0xff]
  %v118 = vld [vmem:[%s5 + $0x28] sm:$0xff]
  %v119 = vld [vmem:[%s5 + $0x30] sm:$0xff]
  %v120 = vld [vmem:[%s5 + $0x38] sm:$0xff]
  %v121 = vld [vmem:[%s5 + $0x40] sm:$0xff]
  %v122 = vld [vmem:[%s5 + $0x48] sm:$0xff]
  %v123 = vld [vmem:[%s5 + $0x50] sm:$0xff]
  %v124 = vld [vmem:[%s5 + $0x58] sm:$0xff]
  %v125 = vld [vmem:[%s5 + $0x60] sm:$0xff]
  %v126 = vld [vmem:[%s5 + $0x68] sm:$0xff]
  %v127 = vld [vmem:[%s5 + $0x70] sm:$0xff]
  %v128 = vld [vmem:[%s5 + $0x78] sm:$0xff]
  %v129 = vld [vmem:[%s6] sm:$0x1]
  %v131 = vperm.slane %v129, 0
  %133 = vmatpush.msra.mxu0 %v128
  %134 = vmatpush.msra.mxu0 %v127
  %135 = vmatpush.msra.mxu0 %v126
  %136 = vmatpush.msra.mxu0 %v125
  %137 = vmatpush.msra.mxu0 %v124
  %138 = vmatpush.msra.mxu0 %v123
  %139 = vmatpush.msra.mxu0 %v122
  %140 = vmatpush.msra.mxu0 %v121
  %141 = vmatpush.msra.mxu0 %v120
  %142 = vmatpush.msra.mxu0 %v119
  %143 = vmatpush.msra.mxu0 %v118
  %144 = vmatpush.msra.mxu0 %v117
  %145 = vmatpush.msra.mxu0 %v116
  %146 = vmatpush.msra.mxu0 %v115
  %147 = vmatpush.msra.mxu0 %v114
  %148 = vmatpush.msra.mxu0 %v113
  %149 = vmatmul.f32.gmra.mxu0 %v112
  %v150 = vpop.f32.mrf.mxu0
  %v151 = vadd.f32 %v131, %v150
  %152 = vdwg.mxu0
  %v153 = vlaneseq
  %v154 = vshrl.u32 %v153, 7
  %v155 = vld [vmem:[%s1] sm:$0x1]
  %v156 = vperm.slane %v155, 0
  %vm157 = vcmp.eq.s32.totalorder %v154, %v156
  %v158 = vsel %vm157, 1, 0
  %v159 = vcvt.s32.f32 %v158
  %v160 = vlaneseq
  %v161 = vand.u32 %v160, 127
  %v162 = vld [vmem:[%s2] sm:$0xff]
  %163 = vset.pattern.permute.xlu0 0
  %164 = vperm.xlu0 %163, %v162
  %v165 = vpop.permute.xlu0 %164
  %vm166 = vcmp.eq.s32.totalorder %v161, %v165
  %v167 = vsel %vm166, 1, 0
  %v168 = vcvt.s32.f32 %v167
  %vm169 = vcmask 60416
  %v170 = vsel %vm169, %v159, 0.0
  %171 = vadd.xlane.f32.xlu0 %v170
  %v172 = vpop.xlane.xlu0 %171
  %vm173 = vcmp.gt.f32.partialorder %v172, 0.0
  %v174 = vsel %vm173, 1, 0
  %v175 = vcvt.s32.f32 %v174
  %v176 = vmax.f32 %v172, 1.0
  %v177 = vrcp.pop %v176
  %vm178 = vcmask 64512
  %v180 = vsel %vm178, %v159, 0
  %182 = vmatpush.msra.mxu0 0.0
  %183 = vmatpush.msra.mxu0 0.0
  %184 = vmatpush.msra.mxu0 0.0
  %185 = vmatpush.msra.mxu0 0.0
  %186 = vmatpush.msra.mxu0 0.0
  %187 = vmatpush.msra.mxu0 0.0
  %188 = vmatpush.msra.mxu0 0.0
  %189 = vmatpush.msra.mxu0 0.0
  %190 = vmatpush.msra.mxu0 0.0
  %191 = vmatpush.msra.mxu0 0.0
  %192 = vmatpush.msra.mxu0 0.0
  %193 = vmatpush.msra.mxu0 0.0
  %194 = vmatpush.msra.mxu0 0.0
  %195 = vmatpush.msra.mxu0 0.0
  %196 = vmatpush.msra.mxu0 0.0
  %197 = vmatpush.msra.mxu0 %v151
  %198 = vmatmul.f32.gmra.mxu0 %v180
  %v199 = vpop.f32.mrf.mxu0
  %v200 = vadd.f32 0.0, %v199
  %201 = vdwg.mxu0
  %v202 = vmul.f32 %v200, %v177
  %vm203 = vcmask 31744
  %v205 = vsel %vm203, %v168, 0
  %vm207 = vcmask 1043456
  %v209 = vsel %vm207, %v202, 0
  %211 = vmatpush.msra.mxu0 0.0
  %212 = vmatpush.msra.mxu0 0.0
  %213 = vmatpush.msra.mxu0 0.0
  %214 = vmatpush.msra.mxu0 0.0
  %215 = vmatpush.msra.mxu0 0.0
  %216 = vmatpush.msra.mxu0 0.0
  %217 = vmatpush.msra.mxu0 0.0
  %218 = vmatpush.msra.mxu0 0.0
  %219 = vmatpush.msra.mxu0 0.0
  %220 = vmatpush.msra.mxu0 0.0
  %221 = vmatpush.msra.mxu0 0.0
  %222 = vmatpush.msra.mxu0 0.0
  %223 = vmatpush.msra.mxu0 0.0
  %224 = vmatpush.msra.mxu0 0.0
  %225 = vmatpush.msra.mxu0 0.0
  %226 = vmatpush.msra.mxu0 %v209
  %227 = vmatmul.f32.gmra.mxu0 %v205
  %v228 = vpop.f32.mrf.mxu0
  %v229 = vadd.f32 0.0, %v228
  %230 = vdwg.mxu0
  %v231 = vsub.f32 %v151, %v229
  %v232 = vmul.f32 %v231, %v231
  %233 = vmatpush.msra.mxu0 0.0
  %234 = vmatpush.msra.mxu0 0.0
  %235 = vmatpush.msra.mxu0 0.0
  %236 = vmatpush.msra.mxu0 0.0
  %237 = vmatpush.msra.mxu0 0.0
  %238 = vmatpush.msra.mxu0 0.0
  %239 = vmatpush.msra.mxu0 0.0
  %240 = vmatpush.msra.mxu0 0.0
  %241 = vmatpush.msra.mxu0 0.0
  %242 = vmatpush.msra.mxu0 0.0
  %243 = vmatpush.msra.mxu0 0.0
  %244 = vmatpush.msra.mxu0 0.0
  %245 = vmatpush.msra.mxu0 0.0
  %246 = vmatpush.msra.mxu0 0.0
  %247 = vmatpush.msra.mxu0 0.0
  %248 = vmatpush.msra.mxu0 %v232
  %249 = vmatmul.f32.gmra.mxu0 %v180
  %v250 = vpop.f32.mrf.mxu0
  %v251 = vadd.f32 0.0, %v250
  %252 = vdwg.mxu0
  %v253 = vsub.f32 %v172, 1.0
  %v254 = vmax.f32 %v253, 1.0
  %v255 = vrcp.pop %v254
  %v256 = vmul.f32 %v251, %v255
  %vm257 = vcmp.gt.f32.partialorder %v172, 1.0
  %v258 = vsel %vm257, 1, 0
  %vm259 = vcmp.eq.s32.totalorder %v258, 1
  %v260 = vsel %vm259, %v256, 0.0
  %v261 = vmul.f32 %v175, %v253
  %v262 = vmul.f32 %v261, 0.25
  %v263 = vld [vmem:[%s7] sm:$0xff]
  %v264 = vld [vmem:[%s7 + $0x8] sm:$0xff]
  %v265 = vld [vmem:[%s7 + $0x10] sm:$0xff]
  %v266 = vld [vmem:[%s7 + $0x18] sm:$0xff]
  %v267 = vld [vmem:[%s7 + $0x20] sm:$0xff]
  %v268 = vld [vmem:[%s7 + $0x28] sm:$0xff]
  %v269 = vld [vmem:[%s7 + $0x30] sm:$0xff]
  %v270 = vld [vmem:[%s7 + $0x38] sm:$0xff]
  %v271 = vld [vmem:[%s7 + $0x40] sm:$0xff]
  %v272 = vld [vmem:[%s7 + $0x48] sm:$0xff]
  %v273 = vld [vmem:[%s7 + $0x50] sm:$0xff]
  %v274 = vld [vmem:[%s7 + $0x58] sm:$0xff]
  %v275 = vld [vmem:[%s7 + $0x60] sm:$0xff]
  %v276 = vld [vmem:[%s7 + $0x68] sm:$0xff]
  %v277 = vld [vmem:[%s7 + $0x70] sm:$0xff]
  %v278 = vld [vmem:[%s7 + $0x78] sm:$0xff]
  %v279 = vld [vmem:[%s8] sm:$0xff]
  %v280 = vld [vmem:[%s8 + $0x8] sm:$0xff]
  %v281 = vld [vmem:[%s8 + $0x10] sm:$0xff]
  %v282 = vld [vmem:[%s8 + $0x18] sm:$0xff]
  %v283 = vld [vmem:[%s8 + $0x20] sm:$0xff]
  %v284 = vld [vmem:[%s8 + $0x28] sm:$0xff]
  %v285 = vld [vmem:[%s8 + $0x30] sm:$0xff]
  %v286 = vld [vmem:[%s8 + $0x38] sm:$0xff]
  %v287 = vld [vmem:[%s8 + $0x40] sm:$0xff]
  %v288 = vld [vmem:[%s8 + $0x48] sm:$0xff]
  %v289 = vld [vmem:[%s8 + $0x50] sm:$0xff]
  %v290 = vld [vmem:[%s8 + $0x58] sm:$0xff]
  %v291 = vld [vmem:[%s8 + $0x60] sm:$0xff]
  %v292 = vld [vmem:[%s8 + $0x68] sm:$0xff]
  %v293 = vld [vmem:[%s8 + $0x70] sm:$0xff]
  %v294 = vld [vmem:[%s8 + $0x78] sm:$0xff]
  %295 = vmatpush.msra.mxu0 %v294
  %296 = vmatpush.msra.mxu0 %v293
  %297 = vmatpush.msra.mxu0 %v292
  %298 = vmatpush.msra.mxu0 %v291
  %299 = vmatpush.msra.mxu0 %v290
  %300 = vmatpush.msra.mxu0 %v289
  %301 = vmatpush.msra.mxu0 %v288
  %302 = vmatpush.msra.mxu0 %v287
  %303 = vmatpush.msra.mxu0 %v286
  %304 = vmatpush.msra.mxu0 %v285
  %305 = vmatpush.msra.mxu0 %v284
  %306 = vmatpush.msra.mxu0 %v283
  %307 = vmatpush.msra.mxu0 %v282
  %308 = vmatpush.msra.mxu0 %v281
  %309 = vmatpush.msra.mxu0 %v280
  %310 = vmatpush.msra.mxu0 %v279
  %311 = vmatmul.f32.gmra.mxu0 %v202
  %v312 = vpop.f32.mrf.mxu0
  %v313 = vadd.f32 0.0, %v312
  %314 = vdwg.mxu0
  %315 = vmatpush.msra.mxu0 %v278
  %316 = vmatpush.msra.mxu0 %v277
  %317 = vmatpush.msra.mxu0 %v276
  %318 = vmatpush.msra.mxu0 %v275
  %319 = vmatpush.msra.mxu0 %v274
  %320 = vmatpush.msra.mxu0 %v273
  %321 = vmatpush.msra.mxu0 %v272
  %322 = vmatpush.msra.mxu0 %v271
  %323 = vmatpush.msra.mxu0 %v270
  %324 = vmatpush.msra.mxu0 %v269
  %325 = vmatpush.msra.mxu0 %v268
  %326 = vmatpush.msra.mxu0 %v267
  %327 = vmatpush.msra.mxu0 %v266
  %328 = vmatpush.msra.mxu0 %v265
  %329 = vmatpush.msra.mxu0 %v264
  %330 = vmatpush.msra.mxu0 %v263
  %331 = vmatmul.f32.gmra.mxu0 %v260
  %v332 = vpop.f32.mrf.mxu0
  %v333 = vadd.f32 %v313, %v332
  %334 = vdwg.mxu0
  %v335 = vld [vmem:[%s9] sm:$0x1]
  %v337 = vperm.slane %v335, 0
  %v339 = vmul.f32 %v262, %v337
  %v340 = vadd.f32 %v333, %v339
  %v341 = vld [vmem:[%s10] sm:$0x1]
  %v343 = vperm.slane %v341, 0
  %v345 = vadd.f32 %v340, %v343
  %v346 = vmax.f32 %v345, 0.0
  %v347 = vld [vmem:[%s11] sm:$0xff]
  %v348 = vld [vmem:[%s11 + $0x8] sm:$0xff]
  %v349 = vld [vmem:[%s11 + $0x10] sm:$0xff]
  %v350 = vld [vmem:[%s11 + $0x18] sm:$0xff]
  %v351 = vld [vmem:[%s12] sm:$0x1]
  %v353 = vperm.slane %v351, 0
  %vm355 = vcmask 261120
  %v357 = vsel %vm355, %v346, 0
  %359 = vmatpush.msra.mxu0 0.0
  %360 = vmatpush.msra.mxu0 0.0
  %361 = vmatpush.msra.mxu0 0.0
  %362 = vmatpush.msra.mxu0 0.0
  %363 = vmatpush.msra.mxu0 0.0
  %364 = vmatpush.msra.mxu0 0.0
  %365 = vmatpush.msra.mxu0 0.0
  %366 = vmatpush.msra.mxu0 0.0
  %367 = vmatpush.msra.mxu0 0.0
  %368 = vmatpush.msra.mxu0 0.0
  %369 = vmatpush.msra.mxu0 0.0
  %370 = vmatpush.msra.mxu0 0.0
  %371 = vmatpush.msra.mxu0 %v350
  %372 = vmatpush.msra.mxu0 %v349
  %373 = vmatpush.msra.mxu0 %v348
  %374 = vmatpush.msra.mxu0 %v347
  %375 = vmatmul.f32.gmra.mxu0 %v357
  %v376 = vpop.f32.mrf.mxu0
  %v377 = vadd.f32 %v353, %v376
  %378 = vdwg.mxu0
  %v379 = vmax.f32 %v377, 0.0
  %v380 = vld [vmem:[%s13] sm:$0xff]
  %v381 = vld [vmem:[%s13 + $0x8] sm:$0xff]
  %v382 = vld [vmem:[%s14] sm:$0x1]
  %v384 = vperm.slane %v382, 0
  %vm386 = vcmask 130048
  %v388 = vsel %vm386, %v379, 0
  %390 = vmatpush.msra.mxu0 0.0
  %391 = vmatpush.msra.mxu0 0.0
  %392 = vmatpush.msra.mxu0 0.0
  %393 = vmatpush.msra.mxu0 0.0
  %394 = vmatpush.msra.mxu0 0.0
  %395 = vmatpush.msra.mxu0 0.0
  %396 = vmatpush.msra.mxu0 0.0
  %397 = vmatpush.msra.mxu0 0.0
  %398 = vmatpush.msra.mxu0 0.0
  %399 = vmatpush.msra.mxu0 0.0
  %400 = vmatpush.msra.mxu0 0.0
  %401 = vmatpush.msra.mxu0 0.0
  %402 = vmatpush.msra.mxu0 0.0
  %403 = vmatpush.msra.mxu0 0.0
  %404 = vmatpush.msra.mxu0 %v381
  %405 = vmatpush.msra.mxu0 %v380
  %406 = vmatmul.f32.gmra.mxu0 %v388
  %v407 = vpop.f32.mrf.mxu0
  %v408 = vadd.f32 %v384, %v407
  %409 = vdwg.mxu0
  %v410 = vsel %vm207, %v175, 0.0
  %v411 = vrot.slane %v410, 4
  %v412 = vadd.f32 %v410, %v411
  %v413 = vrot.slane %v412, 2
  %v414 = vadd.f32 %v412, %v413
  %v415 = vrot.slane %v414, 1
  %v416 = vadd.f32 %v414, %v415
  %v417 = vmax.f32 %v416, 1.0
  %v418 = vrcp.pop %v417
  %v419 = vmul.f32 %v175, %v408
  %vm420 = vcmask 125952
  %v421 = vsel %vm420, %v419, 0.0
  %v422 = vrot.slane %v421, 4
  %v423 = vadd.f32 %v421, %v422
  %v424 = vrot.slane %v423, 2
  %v425 = vadd.f32 %v423, %v424
  %v426 = vrot.slane %v425, 1
  %v427 = vadd.f32 %v425, %v426
  %v428 = vmul.f32 %v427, %v418
  %v429 = vsub.f32 %v408, %v428
  %v430 = vmul.f32 %v175, %v429
  %v431 = vmul.f32 %v430, %v429
  %v432 = vsel %vm420, %v431, 0.0
  %v433 = vrot.slane %v432, 4
  %v434 = vadd.f32 %v432, %v433
  %v435 = vrot.slane %v434, 2
  %v436 = vadd.f32 %v434, %v435
  %v437 = vrot.slane %v436, 1
  %v438 = vadd.f32 %v436, %v437
  %v439 = vsub.f32 %v416, 1.0
  %v440 = vmax.f32 %v439, 1.0
  %v441 = vrcp.pop %v440
  %v442 = vmul.f32 %v438, %v441
  %vm443 = vcmp.gt.f32.partialorder %v416, 1.0
  %v444 = vsel %vm443, 1, 0
  %vm445 = vcmp.eq.s32.totalorder %v444, 1
  %v446 = vsel %vm445, %v442, 0.0
  %v447 = vsel %vm207, %v262, 0.0
  %v448 = vrot.slane %v447, 4
  %v449 = vadd.f32 %v447, %v448
  %v450 = vrot.slane %v449, 2
  %v451 = vadd.f32 %v449, %v450
  %v452 = vrot.slane %v451, 1
  %v453 = vadd.f32 %v451, %v452
  %v454 = vmul.f32 %v453, %v418
  %v455 = vmul.f32 %v202, %v202
  %v456 = vsel %vm207, %v455, 0.0
  %457 = vadd.xlane.f32.xlu0 %v456
  %v458 = vpop.xlane.xlu0 %457
  %v459 = vmax.f32 %v458, 1e-14
  %v460 = vrsqrt.pop %v459
  %v461 = vmul.f32 %v460, %v459
  %v462 = vmul.f32 %v461, %v460
  %v463 = vmul.f32 0.5, %v462
  %v464 = vsub.f32 1.5, %v463
  %v465 = vmul.f32 %v460, %v464
  %vm466 = vweird.f32 %v459
  %vm467 = vweird.f32 %v460
  %vm468 = vmor %vm466, %vm467
  %v469 = vsel %vm468, %v460, %v465
  %v470 = vmul.f32 %v202, %v469
  %471 = vmatpush.xpose.msra.mxu0 0.0
  %472 = vmatpush.xpose.msra.mxu0 0.0
  %473 = vmatpush.xpose.msra.mxu0 0.0
  %474 = vmatpush.xpose.msra.mxu0 0.0
  %475 = vmatpush.xpose.msra.mxu0 0.0
  %476 = vmatpush.xpose.msra.mxu0 0.0
  %477 = vmatpush.xpose.msra.mxu0 0.0
  %478 = vmatpush.xpose.msra.mxu0 0.0
  %479 = vmatpush.xpose.msra.mxu0 0.0
  %480 = vmatpush.xpose.msra.mxu0 0.0
  %481 = vmatpush.xpose.msra.mxu0 0.0
  %482 = vmatpush.xpose.msra.mxu0 0.0
  %483 = vmatpush.xpose.msra.mxu0 0.0
  %484 = vmatpush.xpose.msra.mxu0 0.0
  %485 = vmatpush.xpose.msra.mxu0 0.0
  %486 = vmatpush.xpose.msra.mxu0 %v470
  %487 = vmatmul.f32.gmra.mxu0 %v470
  %v488 = vpop.f32.mrf.mxu0
  %v489 = vadd.f32 0.0, %v488
  %490 = vdwg.mxu0
  %vm491 = vcmp.lt.s32.totalorder %v154, %v161
  %v492 = vsel %vm491, 1, 0
  %v493 = vcvt.s32.f32 %v492
  %v494 = vmul.f32 %v493, %v175
  %vm495 = vcmask 27648
  %v496 = vsel %vm495, %v494, 0.0
  %v497 = vrot.slane %v496, 4
  %v498 = vadd.f32 %v496, %v497
  %v499 = vrot.slane %v498, 2
  %v500 = vadd.f32 %v498, %v499
  %v501 = vrot.slane %v500, 1
  %v502 = vadd.f32 %v500, %v501
  %vm503 = vcmp.lt.s32.totalorder %v161, %v154
  %v504 = vsel %vm503, 1, 0
  %v505 = vcvt.s32.f32 %v504
  %v506 = vsub.f32 %v493, %v505
  %v507 = vmul.f32 %v506, %v489
  %v508 = vmul.f32 %v507, %v502
  %v509 = vsel %vm495, %v508, 0.0
  %510 = vadd.xlane.f32.xlu0 %v509
  %v511 = vpop.xlane.xlu0 %510
  %v512 = vsel %vm207, %v511, 0.0
  %v513 = vrot.slane %v512, 4
  %v514 = vadd.f32 %v512, %v513
  %v515 = vrot.slane %v514, 2
  %v516 = vadd.f32 %v514, %v515
  %v517 = vrot.slane %v516, 1
  %v518 = vadd.f32 %v516, %v517
  %v519 = vld [vmem:[%s15] sm:$0xff]
  %v520 = vld [vmem:[%s15 + $0x8] sm:$0xff]
  %v521 = vld [vmem:[%s16] sm:$0xff]
  %v522 = vld [vmem:[%s16 + $0x8] sm:$0xff]
  %v524 = vsel %vm386, %v428, 0
  %526 = vmatpush.msra.mxu0 0.0
  %527 = vmatpush.msra.mxu0 0.0
  %528 = vmatpush.msra.mxu0 0.0
  %529 = vmatpush.msra.mxu0 0.0
  %530 = vmatpush.msra.mxu0 0.0
  %531 = vmatpush.msra.mxu0 0.0
  %532 = vmatpush.msra.mxu0 0.0
  %533 = vmatpush.msra.mxu0 0.0
  %534 = vmatpush.msra.mxu0 0.0
  %535 = vmatpush.msra.mxu0 0.0
  %536 = vmatpush.msra.mxu0 0.0
  %537 = vmatpush.msra.mxu0 0.0
  %538 = vmatpush.msra.mxu0 0.0
  %539 = vmatpush.msra.mxu0 0.0
  %540 = vmatpush.msra.mxu0 %v522
  %541 = vmatpush.msra.mxu0 %v521
  %542 = vmatmul.f32.gmra.mxu0 %v524
  %v543 = vpop.f32.mrf.mxu0
  %v544 = vadd.f32 0.0, %v543
  %545 = vdwg.mxu0
  %v547 = vsel %vm386, %v446, 0
  %549 = vmatpush.msra.mxu0 0.0
  %550 = vmatpush.msra.mxu0 0.0
  %551 = vmatpush.msra.mxu0 0.0
  %552 = vmatpush.msra.mxu0 0.0
  %553 = vmatpush.msra.mxu0 0.0
  %554 = vmatpush.msra.mxu0 0.0
  %555 = vmatpush.msra.mxu0 0.0
  %556 = vmatpush.msra.mxu0 0.0
  %557 = vmatpush.msra.mxu0 0.0
  %558 = vmatpush.msra.mxu0 0.0
  %559 = vmatpush.msra.mxu0 0.0
  %560 = vmatpush.msra.mxu0 0.0
  %561 = vmatpush.msra.mxu0 0.0
  %562 = vmatpush.msra.mxu0 0.0
  %563 = vmatpush.msra.mxu0 %v520
  %564 = vmatpush.msra.mxu0 %v519
  %565 = vmatmul.f32.gmra.mxu0 %v547
  %v566 = vpop.f32.mrf.mxu0
  %v567 = vadd.f32 %v544, %v566
  %568 = vdwg.mxu0
  %v569 = vld [vmem:[%s17] sm:$0x1]
  %v570 = vmul.f32 %v454, %v569
  %v571 = vadd.f32 %v567, %v570
  %v572 = vld [vmem:[%s18] sm:$0x1]
  %v573 = vmul.f32 %v518, %v572
  %v574 = vadd.f32 %v571, %v573
  %v575 = vld [vmem:[%s19] sm:$0x1]
  %v576 = vadd.f32 %v574, %v575
  %v577 = vmax.f32 %v576, 0.0
  %v578 = vld [vmem:[%s20] sm:$0xff]
  %v579 = vld [vmem:[%s20 + $0x8] sm:$0xff]
  %v580 = vld [vmem:[%s20 + $0x10] sm:$0xff]
  %v581 = vld [vmem:[%s20 + $0x18] sm:$0xff]
  %v582 = vld [vmem:[%s21] sm:$0x1]
  %v584 = vsel %vm355, %v577, 0
  %586 = vmatpush.msra.mxu0 0.0
  %587 = vmatpush.msra.mxu0 0.0
  %588 = vmatpush.msra.mxu0 0.0
  %589 = vmatpush.msra.mxu0 0.0
  %590 = vmatpush.msra.mxu0 0.0
  %591 = vmatpush.msra.mxu0 0.0
  %592 = vmatpush.msra.mxu0 0.0
  %593 = vmatpush.msra.mxu0 0.0
  %594 = vmatpush.msra.mxu0 0.0
  %595 = vmatpush.msra.mxu0 0.0
  %596 = vmatpush.msra.mxu0 0.0
  %597 = vmatpush.msra.mxu0 0.0
  %598 = vmatpush.msra.mxu0 %v581
  %599 = vmatpush.msra.mxu0 %v580
  %600 = vmatpush.msra.mxu0 %v579
  %601 = vmatpush.msra.mxu0 %v578
  %602 = vmatmul.f32.gmra.mxu0 %v584
  %v603 = vpop.f32.mrf.mxu0
  %v604 = vadd.f32 %v582, %v603
  %605 = vdwg.mxu0
  %606 = vst [vmem:[%s22] sm:$0x1] %v604
  // Predicated region
  $region90: #{task_encoder_forward.1} parent=0 // pred_check
    _
  $region91: #{task_encoder_forward.1} parent=0 // pred_check_branch
    %608 = sbr.rel (0) target = $region93
  $region92: #{task_encoder_forward.1} parent=0 // pred_region
    _
  $region93: #{task_encoder_forward.1} parent=0 // pred_fallthru
    _
  // Predicated region
  $region94: #{task_encoder_forward.1} parent=0 // pred_check
    _
  $region95: #{task_encoder_forward.1} parent=0 // pred_check_branch
    %610 = sbr.rel (0) target = $region97
  $region96: #{task_encoder_forward.1} parent=0 // pred_region
    _
  $region97: #{task_encoder_forward.1} parent=0 // pred_fallthru
    _

</llo_original>
